<compile_context>
chip_gen: v6e
topology: v6e:2x2x1
jax: 0.10.0
libtpu: 0.0.40
codegen_flags: <defaults>
</compile_context>

<pallas_src>
from functools import partial

import numpy as np
import jax
import jax.numpy as jnp
from jax import lax
from jax.experimental import pallas as pl
from jax.experimental.pallas import tpu as pltpu


def make_kernel(k):
    k = np.asarray(k, dtype=np.float32)
    if k.ndim == 1:
        k = k[None, :] * k[:, None]
    k = k / k.sum()
    return k


def _blur_body(x_ref, o_ref, xp_ref, *, taps_y, taps_x, k2d_flip, separable,
               pad0, pad1, h, w, h_out, w_out):
    # x_ref:  (TB, H, W)        input block (unpadded)
    # o_ref:  (TB, H_out, W_out) output block
    # xp_ref: (TB, H_pad, W_pad) VMEM scratch holding the zero-padded slab
    if pad0 == 0 and pad1 == 0:
        xv = x_ref[...].astype(jnp.float32)                      # (TB, H_p, W_p)
    else:
        # Fused zero padding: zero the slab, write the input into the interior.
        xp_ref[...] = jnp.zeros_like(xp_ref)
        xp_ref[:, pad0:pad0 + h, pad0:pad0 + w] = x_ref[...].astype(jnp.float32)
        xv = xp_ref[...]                                         # (TB, H_p, W_p)

    if separable:
        kh, kw = len(taps_y), len(taps_x)
        # Vertical (sublane) pass: (TB, H_p, W_p) -> (TB, H_out, W_p).
        v = taps_y[0] * xv[:, 0:h_out, :]
        for ky in range(1, kh):
            v = v + taps_y[ky] * xv[:, ky:ky + h_out, :]
        # Horizontal (lane) pass: (TB, H_out, W_p) -> (TB, H_out, W_out).
        acc = taps_x[0] * v[:, :, 0:w_out]
        for kx in range(1, kw):
            acc = acc + taps_x[kx] * v[:, :, kx:kx + w_out]
    else:
        # Generic (non-separable 2-D kernel) fallback: unrolled 2-D MAC.
        kh, kw = k2d_flip.shape
        acc = jnp.zeros((xv.shape[0], h_out, w_out), jnp.float32)
        for ky in range(kh):
            for kx in range(kw):
                acc = acc + float(k2d_flip[ky, kx]) * xv[:, ky:ky + h_out, kx:kx + w_out]

    o_ref[...] = acc.astype(o_ref.dtype)


def blur(x, kernel, pad, upsample_factor=1, reflection_pad=False):
    """Pallas equivalent of Blur.forward. x is NCHW (float32 or bfloat16)."""
    k_in = np.asarray(kernel, dtype=np.float32)
    k2d = make_kernel(kernel)
    if upsample_factor > 1:
        k2d = k2d * (upsample_factor ** 2)

    pad0, pad1 = pad
    if reflection_pad:
        # TODO(synk): reflection padding is applied in the wrapper (one extra HBM
        # pass); only the zero-pad path is fused into the kernel.
        x = jnp.pad(x, ((0, 0), (0, 0), (pad0, pad1), (pad0, pad1)), mode="reflect")
        pad0, pad1 = 0, 0
    # TODO(synk): negative pads (cropping) in upfirdn2d are not handled; Blur only
    # ever passes non-negative pads.
    assert pad0 >= 0 and pad1 >= 0

    n, c, h, w = x.shape
    kh, kw = k2d.shape
    h_p, w_p = h + pad0 + pad1, w + pad0 + pad1
    h_out, w_out = h_p - kh + 1, w_p - kw + 1

    separable = (k_in.ndim == 1)
    if separable:
        t1f = (k_in / k_in.sum())[::-1]                   # flipped normalized 1-D taps
        taps_y = tuple(float(v) for v in t1f)
        taps_x = tuple(float(v) * (upsample_factor ** 2) for v in t1f)
        k2d_flip = None
    else:
        taps_y = taps_x = None
        k2d_flip = np.ascontiguousarray(k2d[::-1, ::-1])  # conv == corr with flipped kernel

    nc = n * c
    xr = x.reshape(nc, h, w)

    # Batch TB images per grid step so each block is ~1 MiB (amortizes per-step
    # overhead and DMA latency) while keeping total VMEM (double-buffered in/out
    # blocks + f32 scratch/intermediates) well under the scoped limit on every
    # generation, including v7x's 64 MiB physical VMEM.
    per_image_bytes = h_p * w_p * 4
    tb_target = max(1, (1 << 20) // per_image_bytes)
    tb = 1
    for d in range(1, nc + 1):
        if nc % d == 0 and d <= tb_target:
            tb = d

    body = partial(
        _blur_body,
        taps_y=taps_y, taps_x=taps_x, k2d_flip=k2d_flip, separable=separable,
        pad0=pad0, pad1=pad1, h=h, w=w, h_out=h_out, w_out=w_out)

    out = pl.pallas_call(
        body,
        out_shape=jax.ShapeDtypeStruct((nc, h_out, w_out), x.dtype),
        grid=(nc // tb,),
        in_specs=[pl.BlockSpec((tb, h, w), lambda i: (i, 0, 0))],
        out_specs=pl.BlockSpec((tb, h_out, w_out), lambda i: (i, 0, 0)),
        scratch_shapes=[pltpu.VMEM((tb, h_p, w_p), jnp.float32)],
        compiler_params=pltpu.CompilerParams(
            dimension_semantics=("parallel",),        # disjoint outputs -> megacore OK
            vmem_limit_bytes=32 * 1024 * 1024),
    )(xr)
    return out.reshape(n, c, h_out, w_out)


def _blur_reference(x, kernel, pad, upsample_factor=1):
    """Pure-JAX reference (depthwise conv) for correctness checking."""
    k = make_kernel(kernel)
    if upsample_factor > 1:
        k = k * (upsample_factor ** 2)
    pad0, pad1 = pad
    n, c, h, w = x.shape
    kflip = np.ascontiguousarray(k[::-1, ::-1])
    filt = jnp.asarray(np.broadcast_to(kflip[None, None], (c, 1, *kflip.shape)))
    return lax.conv_general_dilated(
        x, filt,
        window_strides=(1, 1),
        padding=((pad0, pad1), (pad0, pad1)),
        dimension_numbers=("NCHW", "OIHW", "NCHW"),
        feature_group_count=c,
    )


if __name__ == "__main__":
    key = jax.random.PRNGKey(0)
    N, C, H, W = 2, 4, 16, 16
    x = jax.random.normal(key, (N, C, H, W), dtype=jnp.float32)

    # Canonical StyleGAN2 blur config: kernel [1, 3, 3, 1], pad (2, 1).
    blur_kernel_taps = [1, 3, 3, 1]
    pad = (2, 1)

    out = blur(x, blur_kernel_taps, pad, upsample_factor=1, reflection_pad=False)
    out = jax.block_until_ready(out)

    ref = _blur_reference(x, blur_kernel_taps, pad, upsample_factor=1)
    ref = jax.block_until_ready(ref)

    assert out.shape == (N, C, H, W), out.shape
    np.testing.assert_allclose(np.asarray(out), np.asarray(ref), rtol=1e-4, atol=1e-5)

    # Also exercise the reflection-pad path (pad fused to 0 inside the kernel).
    out_r = blur(x, blur_kernel_taps, (1, 1), upsample_factor=1, reflection_pad=True)
    out_r = jax.block_until_ready(out_r)
    x_refl = jnp.pad(x, ((0, 0), (0, 0), (1, 1), (1, 1)), mode="reflect")
    ref_r = _blur_reference(x_refl, blur_kernel_taps, (0, 0), upsample_factor=1)
    ref_r = jax.block_until_ready(ref_r)
    np.testing.assert_allclose(np.asarray(out_r), np.asarray(ref_r), rtol=1e-4, atol=1e-5)

    print("KERNEL_OK")
</pallas_src>

<mosaic_0001>
module attributes {stable_mosaic.version = 11 : i64} {
  func.func @_blur_body(%arg0: i32, %arg1: memref<8x16x16xf32, #tpu.memory_space<vmem>>, %arg2: memref<8x16x16xf32, #tpu.memory_space<vmem>>, %arg3: memref<8x19x19xf32, #tpu.memory_space<vmem>>) attributes {dimension_semantics = [#tpu.dimension_semantics<parallel>], iteration_bounds = array<i64: 1>, scalar_prefetch = 0 : i64, scratch_operands = 1 : i64, tpu.core_type = #tpu.core_type<tc>, window_params = [{transform_indices = @transform_0, window_bounds = array<i64: 8, 16, 16>}, {transform_indices = @transform_1, window_bounds = array<i64: 8, 16, 16>}]} {
    %cst = arith.constant 0.000000e+00 : f32
    %0 = vector.broadcast %cst : f32 to vector<8x19x19xf32>
    %c0 = arith.constant 0 : index
    %c0_0 = arith.constant 0 : index
    %c0_1 = arith.constant 0 : index
    %1 = vector.load %arg3[%c0, %c0_0, %c0_1] : memref<8x19x19xf32, #tpu.memory_space<vmem>>, vector<8x19x19xf32>
    tpu.vector_store %arg3[%c0, %c0_0, %c0_1], %0 {strides = array<i32>} : memref<8x19x19xf32, #tpu.memory_space<vmem>>, vector<8x19x19xf32>,
    %c0_2 = arith.constant 0 : index
    %c0_3 = arith.constant 0 : index
    %c0_4 = arith.constant 0 : index
    %2 = vector.load %arg1[%c0_2, %c0_3, %c0_4] : memref<8x16x16xf32, #tpu.memory_space<vmem>>, vector<8x16x16xf32>
    %c0_5 = arith.constant 0 : index
    %c2 = arith.constant 2 : index
    %c2_6 = arith.constant 2 : index
    %3 = vector.load %arg3[%c0_5, %c2, %c2_6] : memref<8x19x19xf32, #tpu.memory_space<vmem>>, vector<8x16x16xf32>
    tpu.vector_store %arg3[%c0_5, %c2, %c2_6], %2 {strides = array<i32>} : memref<8x19x19xf32, #tpu.memory_space<vmem>>, vector<8x16x16xf32>,
    %c0_7 = arith.constant 0 : index
    %c0_8 = arith.constant 0 : index
    %c0_9 = arith.constant 0 : index
    %4 = vector.load %arg3[%c0_7, %c0_8, %c0_9] : memref<8x19x19xf32, #tpu.memory_space<vmem>>, vector<8x19x19xf32>
    %5 = vector.extract_strided_slice %4 {offsets = [0, 0, 0], sizes = [8, 16, 19], strides = [1, 1, 1]} : vector<8x19x19xf32> to vector<8x16x19xf32>
    %cst_10 = arith.constant 1.250000e-01 : f32
    %6 = vector.broadcast %cst_10 : f32 to vector<8x16x19xf32>
    %7 = arith.mulf %6, %5 : vector<8x16x19xf32>
    %8 = vector.extract_strided_slice %4 {offsets = [0, 1, 0], sizes = [8, 16, 19], strides = [1, 1, 1]} : vector<8x19x19xf32> to vector<8x16x19xf32>
    %cst_11 = arith.constant 3.750000e-01 : f32
    %9 = vector.broadcast %cst_11 : f32 to vector<8x16x19xf32>
    %10 = arith.mulf %9, %8 : vector<8x16x19xf32>
    %11 = arith.addf %7, %10 : vector<8x16x19xf32>
    %12 = vector.extract_strided_slice %4 {offsets = [0, 2, 0], sizes = [8, 16, 19], strides = [1, 1, 1]} : vector<8x19x19xf32> to vector<8x16x19xf32>
    %cst_12 = arith.constant 3.750000e-01 : f32
    %13 = vector.broadcast %cst_12 : f32 to vector<8x16x19xf32>
    %14 = arith.mulf %13, %12 : vector<8x16x19xf32>
    %15 = arith.addf %11, %14 : vector<8x16x19xf32>
    %16 = vector.extract_strided_slice %4 {offsets = [0, 3, 0], sizes = [8, 16, 19], strides = [1, 1, 1]} : vector<8x19x19xf32> to vector<8x16x19xf32>
    %cst_13 = arith.constant 1.250000e-01 : f32
    %17 = vector.broadcast %cst_13 : f32 to vector<8x16x19xf32>
    %18 = arith.mulf %17, %16 : vector<8x16x19xf32>
    %19 = arith.addf %15, %18 : vector<8x16x19xf32>
    %20 = vector.extract_strided_slice %19 {offsets = [0, 0, 0], sizes = [8, 16, 16], strides = [1, 1, 1]} : vector<8x16x19xf32> to vector<8x16x16xf32>
    %cst_14 = arith.constant 1.250000e-01 : f32
    %21 = vector.broadcast %cst_14 : f32 to vector<8x16x16xf32>
    %22 = arith.mulf %21, %20 : vector<8x16x16xf32>
    %23 = vector.extract_strided_slice %19 {offsets = [0, 0, 1], sizes = [8, 16, 16], strides = [1, 1, 1]} : vector<8x16x19xf32> to vector<8x16x16xf32>
    %cst_15 = arith.constant 3.750000e-01 : f32
    %24 = vector.broadcast %cst_15 : f32 to vector<8x16x16xf32>
    %25 = arith.mulf %24, %23 : vector<8x16x16xf32>
    %26 = arith.addf %22, %25 : vector<8x16x16xf32>
    %27 = vector.extract_strided_slice %19 {offsets = [0, 0, 2], sizes = [8, 16, 16], strides = [1, 1, 1]} : vector<8x16x19xf32> to vector<8x16x16xf32>
    %cst_16 = arith.constant 3.750000e-01 : f32
    %28 = vector.broadcast %cst_16 : f32 to vector<8x16x16xf32>
    %29 = arith.mulf %28, %27 : vector<8x16x16xf32>
    %30 = arith.addf %26, %29 : vector<8x16x16xf32>
    %31 = vector.extract_strided_slice %19 {offsets = [0, 0, 3], sizes = [8, 16, 16], strides = [1, 1, 1]} : vector<8x16x19xf32> to vector<8x16x16xf32>
    %cst_17 = arith.constant 1.250000e-01 : f32
    %32 = vector.broadcast %cst_17 : f32 to vector<8x16x16xf32>
    %33 = arith.mulf %32, %31 : vector<8x16x16xf32>
    %34 = arith.addf %30, %33 : vector<8x16x16xf32>
    %c0_18 = arith.constant 0 : index
    %c0_19 = arith.constant 0 : index
    %c0_20 = arith.constant 0 : index
    %35 = vector.load %arg2[%c0_18, %c0_19, %c0_20] : memref<8x16x16xf32, #tpu.memory_space<vmem>>, vector<8x16x16xf32>
    tpu.vector_store %arg2[%c0_18, %c0_19, %c0_20], %34 {strides = array<i32>} : memref<8x16x16xf32, #tpu.memory_space<vmem>>, vector<8x16x16xf32>,
    return
  }
  func.func @transform_0(%arg0: i32) -> (i32, i32, i32) {
    %c0_i32 = arith.constant 0 : i32
    %c0_i32_0 = arith.constant 0 : i32
    %c0_i32_1 = arith.constant 0 : i32
    return %arg0, %c0_i32, %c0_i32_0 : i32, i32, i32
  }
  func.func @transform_1(%arg0: i32) -> (i32, i32, i32) {
    %c0_i32 = arith.constant 0 : i32
    %c0_i32_0 = arith.constant 0 : i32
    %c0_i32_1 = arith.constant 0 : i32
    return %arg0, %c0_i32, %c0_i32_0 : i32, i32, i32
  }
}

</mosaic_0001>

<llo_original>
// kernel: tpu_custom_call.1
$region0: #{tpu_custom_call.1}
  #allocation0 [shape = 'u32[]', space=smem, size = 0x4, offset = 0x4, fixed_abs, tag = 'smem constant byte address 0x4 - core index']
  #allocation1 [shape = 'u32[144,128]{1,0:T(1,128)}', space=vmem, size = 0x12000, scoped, tag = 'internal scratch']
  #allocation2 [shape = 'f32[8,19,19]{2,1,0:T(8,128)}', space=vmem, size = 0x18000, scoped, tag = 'scratch operand']
  %s0 = inlined_call_operand.hbm [shape: f32[8,16,16], index: 0, kind: input, shape index: {}]
  %s1 = inlined_call_operand.hbm [shape: f32[8,16,16], index: 1, kind: output, shape index: {}]
  %s2 = sld [smem:[#allocation0]]
  $region18: #{tpu_custom_call.1} parent=0
    _
  %s4 = ssub.s32 1, %s2
  %s5 = scalar_select 0, %s4, %s2
  $region1: #{tpu_custom_call.1} parent=0
    #allocation3 [shape = 'u8[65536]{0}', space=vmem, size = 0x10000, scoped, tag = 'input window, operand 0, single buffered']
    #allocation4 [shape = 's32[1]{0}', space=sflag, size = 0x4, scoped, tag = 'scoped memory for tpu_custom_call.1']
    #allocation5 [shape = 's32[1]{0}', space=sflag, size = 0x4, scoped, tag = 'scoped memory for tpu_custom_call.1']
    #allocation6 [shape = 'u8[65536]{0}', space=vmem, size = 0x10000, scoped, tag = 'output window, operand 0, single buffered']
    %6 = vsyncpa [#allocation4], 0
    %7 = vsyncpa [#allocation5], 0
    // Predicated region
    $region2: #{tpu_custom_call.1} parent=1 // pred_check
      _
    $region3: #{tpu_custom_call.1} parent=1 // pred_check_branch
      %9 = sbr.rel (0) target = $region5
    $region4: #{tpu_custom_call.1} parent=1 // pred_region
      %s11 = ssub.s32 2048, 2048
      %12 = vsyncadd [#allocation4], %s11
      %s13 = sshll.u32 [#allocation3], 4
      %s14 = int_to_ptr.vmem [resolvable:$true] %s13
      %19 = dma.hbm_to_vmem [thread:$0]  %s0, 2048, %s14, [#allocation4], 128, 128, 8
    $region5: #{tpu_custom_call.1} parent=1 // pred_fallthru
      _
    // Predicated region
    $region6: #{tpu_custom_call.1} parent=1 // pred_check
      _
    $region7: #{tpu_custom_call.1} parent=1 // pred_check_branch
      %21 = sbr.rel (0) target = $region9
    $region8: #{tpu_custom_call.1} parent=1 // pred_region
      %22 = dma.done [#allocation4], 2048
    $region9: #{tpu_custom_call.1} parent=1 // pred_fallthru
      _
    %vm23 = vcmask 154624
    %24 = vst.msk [vmem:[#allocation2] sm:$0xff] %vm23, 0.0
    %25 = vst.msk [vmem:[#allocation2 + $0x8] sm:$0xff] %vm23, 0.0
    %vm26 = vcmask 149504
    %27 = vst.msk [vmem:[#allocation2 + $0x10] sm:$0x7] %vm26, 0.0
    %28 = vst.msk [vmem:[#allocation2 + $0x18] sm:$0xff] %vm23, 0.0
    %29 = vst.msk [vmem:[#allocation2 + $0x20] sm:$0xff] %vm23, 0.0
    %30 = vst.msk [vmem:[#allocation2 + $0x28] sm:$0x7] %vm26, 0.0
    %31 = vst.msk [vmem:[#allocation2 + $0x30] sm:$0xff] %vm23, 0.0
    %32 = vst.msk [vmem:[#allocation2 + $0x38] sm:$0xff] %vm23, 0.0
    %33 = vst.msk [vmem:[#allocation2 + $0x40] sm:$0x7] %vm26, 0.0
    %34 = vst.msk [vmem:[#allocation2 + $0x48] sm:$0xff] %vm23, 0.0
    %35 = vst.msk [vmem:[#allocation2 + $0x50] sm:$0xff] %vm23, 0.0
    %36 = vst.msk [vmem:[#allocation2 + $0x58] sm:$0x7] %vm26, 0.0
    %37 = vst.msk [vmem:[#allocation2 + $0x60] sm:$0xff] %vm23, 0.0
    %38 = vst.msk [vmem:[#allocation2 + $0x68] sm:$0xff] %vm23, 0.0
    %39 = vst.msk [vmem:[#allocation2 + $0x70] sm:$0x7] %vm26, 0.0
    %40 = vst.msk [vmem:[#allocation2 + $0x78] sm:$0xff] %vm23, 0.0
    %41 = vst.msk [vmem:[#allocation2 + $0x80] sm:$0xff] %vm23, 0.0
    %42 = vst.msk [vmem:[#allocation2 + $0x88] sm:$0x7] %vm26, 0.0
    %43 = vst.msk [vmem:[#allocation2 + $0x90] sm:$0xff] %vm23, 0.0
    %44 = vst.msk [vmem:[#allocation2 + $0x98] sm:$0xff] %vm23, 0.0
    %45 = vst.msk [vmem:[#allocation2 + $0xa0] sm:$0x7] %vm26, 0.0
    %46 = vst.msk [vmem:[#allocation2 + $0xa8] sm:$0xff] %vm23, 0.0
    %47 = vst.msk [vmem:[#allocation2 + $0xb0] sm:$0xff] %vm23, 0.0
    %48 = vst.msk [vmem:[#allocation2 + $0xb8] sm:$0x7] %vm26, 0.0
    %v49 = vld [vmem:[#allocation3] sm:$0xff]
    %v50 = vld [vmem:[#allocation3 + $0x8] sm:$0xff]
    %v51 = vld [vmem:[#allocation3 + $0x10] sm:$0xff]
    %v52 = vld [vmem:[#allocation3 + $0x18] sm:$0xff]
    %v53 = vld [vmem:[#allocation3 + $0x20] sm:$0xff]
    %v54 = vld [vmem:[#allocation3 + $0x28] sm:$0xff]
    %v55 = vld [vmem:[#allocation3 + $0x30] sm:$0xff]
    %v56 = vld [vmem:[#allocation3 + $0x38] sm:$0xff]
    %v57 = vld [vmem:[#allocation3 + $0x40] sm:$0xff]
    %v58 = vld [vmem:[#allocation3 + $0x48] sm:$0xff]
    %v59 = vld [vmem:[#allocation3 + $0x50] sm:$0xff]
    %v60 = vld [vmem:[#allocation3 + $0x58] sm:$0xff]
    %v61 = vld [vmem:[#allocation3 + $0x60] sm:$0xff]
    %v62 = vld [vmem:[#allocation3 + $0x68] sm:$0xff]
    %v63 = vld [vmem:[#allocation3 + $0x70] sm:$0xff]
    %v64 = vld [vmem:[#allocation3 + $0x78] sm:$0xff]
    %81 = vrot.lane.b32.xlu0 %v49, 2
    %v82 = vpop.permute.xlu0 %81
    %83 = vrot.lane.b32.xlu0 %v50, 2
    %v84 = vpop.permute.xlu0 %83
    %85 = vrot.lane.b32.xlu0 %v51, 2
    %v86 = vpop.permute.xlu0 %85
    %87 = vrot.lane.b32.xlu0 %v52, 2
    %v88 = vpop.permute.xlu0 %87
    %89 = vrot.lane.b32.xlu0 %v53, 2
    %v90 = vpop.permute.xlu0 %89
    %91 = vrot.lane.b32.xlu0 %v54, 2
    %v92 = vpop.permute.xlu0 %91
    %93 = vrot.lane.b32.xlu0 %v55, 2
    %v94 = vpop.permute.xlu0 %93
    %95 = vrot.lane.b32.xlu0 %v56, 2
    %v96 = vpop.permute.xlu0 %95
    %97 = vrot.lane.b32.xlu0 %v57, 2
    %v98 = vpop.permute.xlu0 %97
    %99 = vrot.lane.b32.xlu0 %v58, 2
    %v100 = vpop.permute.xlu0 %99
    %101 = vrot.lane.b32.xlu0 %v59, 2
    %v102 = vpop.permute.xlu0 %101
    %103 = vrot.lane.b32.xlu0 %v60, 2
    %v104 = vpop.permute.xlu0 %103
    %105 = vrot.lane.b32.xlu0 %v61, 2
    %v106 = vpop.permute.xlu0 %105
    %107 = vrot.lane.b32.xlu0 %v62, 2
    %v108 = vpop.permute.xlu0 %107
    %109 = vrot.lane.b32.xlu0 %v63, 2
    %v110 = vpop.permute.xlu0 %109
    %111 = vrot.lane.b32.xlu0 %v64, 2
    %v112 = vpop.permute.xlu0 %111
    %vm129 = vcmask 146448
    %130 = vst.msk [vmem:[#allocation2 + $0x2] sm:$0xff] %vm129, %v82
    %131 = vst.msk [vmem:[#allocation2 + $0xa] sm:$0xff] %vm129, %v84
    %132 = vst.msk [vmem:[#allocation2 + $0x1a] sm:$0xff] %vm129, %v86
    %133 = vst.msk [vmem:[#allocation2 + $0x22] sm:$0xff] %vm129, %v88
    %134 = vst.msk [vmem:[#allocation2 + $0x32] sm:$0xff] %vm129, %v90
    %135 = vst.msk [vmem:[#allocation2 + $0x3a] sm:$0xff] %vm129, %v92
    %136 = vst.msk [vmem:[#allocation2 + $0x4a] sm:$0xff] %vm129, %v94
    %137 = vst.msk [vmem:[#allocation2 + $0x52] sm:$0xff] %vm129, %v96
    %138 = vst.msk [vmem:[#allocation2 + $0x62] sm:$0xff] %vm129, %v98
    %139 = vst.msk [vmem:[#allocation2 + $0x6a] sm:$0xff] %vm129, %v100
    %140 = vst.msk [vmem:[#allocation2 + $0x7a] sm:$0xff] %vm129, %v102
    %141 = vst.msk [vmem:[#allocation2 + $0x82] sm:$0xff] %vm129, %v104
    %142 = vst.msk [vmem:[#allocation2 + $0x92] sm:$0xff] %vm129, %v106
    %143 = vst.msk [vmem:[#allocation2 + $0x9a] sm:$0xff] %vm129, %v108
    %144 = vst.msk [vmem:[#allocation2 + $0xaa] sm:$0xff] %vm129, %v110
    %145 = vst.msk [vmem:[#allocation2 + $0xb2] sm:$0xff] %vm129, %v112
    %v146 = vld [vmem:[#allocation2] sm:$0xff]
    %v147 = vld [vmem:[#allocation2 + $0x8] sm:$0xff]
    %v148 = vld [vmem:[#allocation2 + $0x10] sm:$0x7]
    %v149 = vld [vmem:[#allocation2 + $0x18] sm:$0xff]
    %v150 = vld [vmem:[#allocation2 + $0x20] sm:$0xff]
    %v151 = vld [vmem:[#allocation2 + $0x28] sm:$0x7]
    %v152 = vld [vmem:[#allocation2 + $0x30] sm:$0xff]
    %v153 = vld [vmem:[#allocation2 + $0x38] sm:$0xff]
    %v154 = vld [vmem:[#allocation2 + $0x40] sm:$0x7]
    %v155 = vld [vmem:[#allocation2 + $0x48] sm:$0xff]
    %v156 = vld [vmem:[#allocation2 + $0x50] sm:$0xff]
    %v157 = vld [vmem:[#allocation2 + $0x58] sm:$0x7]
    %v158 = vld [vmem:[#allocation2 + $0x60] sm:$0xff]
    %v159 = vld [vmem:[#allocation2 + $0x68] sm:$0xff]
    %v160 = vld [vmem:[#allocation2 + $0x70] sm:$0x7]
    %v161 = vld [vmem:[#allocation2 + $0x78] sm:$0xff]
    %v162 = vld [vmem:[#allocation2 + $0x80] sm:$0xff]
    %v163 = vld [vmem:[#allocation2 + $0x88] sm:$0x7]
    %v164 = vld [vmem:[#allocation2 + $0x90] sm:$0xff]
    %v165 = vld [vmem:[#allocation2 + $0x98] sm:$0xff]
    %v166 = vld [vmem:[#allocation2 + $0xa0] sm:$0x7]
    %v167 = vld [vmem:[#allocation2 + $0xa8] sm:$0xff]
    %v168 = vld [vmem:[#allocation2 + $0xb0] sm:$0xff]
    %v169 = vld [vmem:[#allocation2 + $0xb8] sm:$0x7]
    %v170 = vmul.f32 %v146, 0.125
    %v171 = vmul.f32 %v147, 0.125
    %v172 = vmul.f32 %v149, 0.125
    %v173 = vmul.f32 %v150, 0.125
    %v174 = vmul.f32 %v152, 0.125
    %v175 = vmul.f32 %v153, 0.125
    %v176 = vmul.f32 %v155, 0.125
    %v177 = vmul.f32 %v156, 0.125
    %v178 = vmul.f32 %v158, 0.125
    %v179 = vmul.f32 %v159, 0.125
    %v180 = vmul.f32 %v161, 0.125
    %v181 = vmul.f32 %v162, 0.125
    %v182 = vmul.f32 %v164, 0.125
    %v183 = vmul.f32 %v165, 0.125
    %v184 = vmul.f32 %v167, 0.125
    %v185 = vmul.f32 %v168, 0.125
    %v186 = vmul.f32 %v146, 0.375
    %v187 = vmul.f32 %v147, 0.375
    %v188 = vmul.f32 %v148, 0.375
    %v189 = vmul.f32 %v149, 0.375
    %v190 = vmul.f32 %v150, 0.375
    %v191 = vmul.f32 %v151, 0.375
    %v192 = vmul.f32 %v152, 0.375
    %v193 = vmul.f32 %v153, 0.375
    %v194 = vmul.f32 %v154, 0.375
    %v195 = vmul.f32 %v155, 0.375
    %v196 = vmul.f32 %v156, 0.375
    %v197 = vmul.f32 %v157, 0.375
    %v198 = vmul.f32 %v158, 0.375
    %v199 = vmul.f32 %v159, 0.375
    %v200 = vmul.f32 %v160, 0.375
    %v201 = vmul.f32 %v161, 0.375
    %v202 = vmul.f32 %v162, 0.375
    %v203 = vmul.f32 %v163, 0.375
    %v204 = vmul.f32 %v164, 0.375
    %v205 = vmul.f32 %v165, 0.375
    %v206 = vmul.f32 %v166, 0.375
    %v207 = vmul.f32 %v167, 0.375
    %v208 = vmul.f32 %v168, 0.375
    %v209 = vmul.f32 %v169, 0.375
    %vm234 = vcmask 1046528
    %v235 = vrot.slane %v186, 1
    %v236 = vrot.slane %v187, 1
    %v237 = vsel %vm234, %v235, %v236
    %v238 = vrot.slane %v188, 1
    %v239 = vsel %vm234, %v236, %v238
    %v240 = vrot.slane %v189, 1
    %v241 = vrot.slane %v190, 1
    %v242 = vsel %vm234, %v240, %v241
    %v243 = vrot.slane %v191, 1
    %v244 = vsel %vm234, %v241, %v243
    %v245 = vrot.slane %v192, 1
    %v246 = vrot.slane %v193, 1
    %v247 = vsel %vm234, %v245, %v246
    %v248 = vrot.slane %v194, 1
    %v249 = vsel %vm234, %v246, %v248
    %v250 = vrot.slane %v195, 1
    %v251 = vrot.slane %v196, 1
    %v252 = vsel %vm234, %v250, %v251
    %v253 = vrot.slane %v197, 1
    %v254 = vsel %vm234, %v251, %v253
    %v255 = vrot.slane %v198, 1
    %v256 = vrot.slane %v199, 1
    %v257 = vsel %vm234, %v255, %v256
    %v258 = vrot.slane %v200, 1
    %v259 = vsel %vm234, %v256, %v258
    %v260 = vrot.slane %v201, 1
    %v261 = vrot.slane %v202, 1
    %v262 = vsel %vm234, %v260, %v261
    %v263 = vrot.slane %v203, 1
    %v264 = vsel %vm234, %v261, %v263
    %v265 = vrot.slane %v204, 1
    %v266 = vrot.slane %v205, 1
    %v267 = vsel %vm234, %v265, %v266
    %v268 = vrot.slane %v206, 1
    %v269 = vsel %vm234, %v266, %v268
    %v270 = vrot.slane %v207, 1
    %v271 = vrot.slane %v208, 1
    %v272 = vsel %vm234, %v270, %v271
    %v273 = vrot.slane %v209, 1
    %v274 = vsel %vm234, %v271, %v273
    %v291 = vadd.f32 %v170, %v237
    %v292 = vadd.f32 %v171, %v239
    %v293 = vadd.f32 %v172, %v242
    %v294 = vadd.f32 %v173, %v244
    %v295 = vadd.f32 %v174, %v247
    %v296 = vadd.f32 %v175, %v249
    %v297 = vadd.f32 %v176, %v252
    %v298 = vadd.f32 %v177, %v254
    %v299 = vadd.f32 %v178, %v257
    %v300 = vadd.f32 %v179, %v259
    %v301 = vadd.f32 %v180, %v262
    %v302 = vadd.f32 %v181, %v264
    %v303 = vadd.f32 %v182, %v267
    %v304 = vadd.f32 %v183, %v269
    %v305 = vadd.f32 %v184, %v272
    %v306 = vadd.f32 %v185, %v274
    %vm307 = vcmask 1045504
    %v308 = vrot.slane %v186, 2
    %v309 = vrot.slane %v187, 2
    %v310 = vsel %vm307, %v308, %v309
    %v311 = vrot.slane %v188, 2
    %v312 = vsel %vm307, %v309, %v311
    %v313 = vrot.slane %v189, 2
    %v314 = vrot.slane %v190, 2
    %v315 = vsel %vm307, %v313, %v314
    %v316 = vrot.slane %v191, 2
    %v317 = vsel %vm307, %v314, %v316
    %v318 = vrot.slane %v192, 2
    %v319 = vrot.slane %v193, 2
    %v320 = vsel %vm307, %v318, %v319
    %v321 = vrot.slane %v194, 2
    %v322 = vsel %vm307, %v319, %v321
    %v323 = vrot.slane %v195, 2
    %v324 = vrot.slane %v196, 2
    %v325 = vsel %vm307, %v323, %v324
    %v326 = vrot.slane %v197, 2
    %v327 = vsel %vm307, %v324, %v326
    %v328 = vrot.slane %v198, 2
    %v329 = vrot.slane %v199, 2
    %v330 = vsel %vm307, %v328, %v329
    %v331 = vrot.slane %v200, 2
    %v332 = vsel %vm307, %v329, %v331
    %v333 = vrot.slane %v201, 2
    %v334 = vrot.slane %v202, 2
    %v335 = vsel %vm307, %v333, %v334
    %v336 = vrot.slane %v203, 2
    %v337 = vsel %vm307, %v334, %v336
    %v338 = vrot.slane %v204, 2
    %v339 = vrot.slane %v205, 2
    %v340 = vsel %vm307, %v338, %v339
    %v341 = vrot.slane %v206, 2
    %v342 = vsel %vm307, %v339, %v341
    %v343 = vrot.slane %v207, 2
    %v344 = vrot.slane %v208, 2
    %v345 = vsel %vm307, %v343, %v344
    %v346 = vrot.slane %v209, 2
    %v347 = vsel %vm307, %v344, %v346
    %v364 = vadd.f32 %v291, %v310
    %v365 = vadd.f32 %v292, %v312
    %v366 = vadd.f32 %v293, %v315
    %v367 = vadd.f32 %v294, %v317
    %v368 = vadd.f32 %v295, %v320
    %v369 = vadd.f32 %v296, %v322
    %v370 = vadd.f32 %v297, %v325
    %v371 = vadd.f32 %v298, %v327
    %v372 = vadd.f32 %v299, %v330
    %v373 = vadd.f32 %v300, %v332
    %v374 = vadd.f32 %v301, %v335
    %v375 = vadd.f32 %v302, %v337
    %v376 = vadd.f32 %v303, %v340
    %v377 = vadd.f32 %v304, %v342
    %v378 = vadd.f32 %v305, %v345
    %v379 = vadd.f32 %v306, %v347
    %v380 = vmul.f32 %v148, 0.125
    %v381 = vmul.f32 %v151, 0.125
    %v382 = vmul.f32 %v154, 0.125
    %v383 = vmul.f32 %v157, 0.125
    %v384 = vmul.f32 %v160, 0.125
    %v385 = vmul.f32 %v163, 0.125
    %v386 = vmul.f32 %v166, 0.125
    %v387 = vmul.f32 %v169, 0.125
    %vm412 = vcmask 1044480
    %v413 = vrot.slane %v170, 3
    %v414 = vrot.slane %v171, 3
    %v415 = vsel %vm412, %v413, %v414
    %v416 = vrot.slane %v380, 3
    %v417 = vsel %vm412, %v414, %v416
    %v418 = vrot.slane %v172, 3
    %v419 = vrot.slane %v173, 3
    %v420 = vsel %vm412, %v418, %v419
    %v421 = vrot.slane %v381, 3
    %v422 = vsel %vm412, %v419, %v421
    %v423 = vrot.slane %v174, 3
    %v424 = vrot.slane %v175, 3
    %v425 = vsel %vm412, %v423, %v424
    %v426 = vrot.slane %v382, 3
    %v427 = vsel %vm412, %v424, %v426
    %v428 = vrot.slane %v176, 3
    %v429 = vrot.slane %v177, 3
    %v430 = vsel %vm412, %v428, %v429
    %v431 = vrot.slane %v383, 3
    %v432 = vsel %vm412, %v429, %v431
    %v433 = vrot.slane %v178, 3
    %v434 = vrot.slane %v179, 3
    %v435 = vsel %vm412, %v433, %v434
    %v436 = vrot.slane %v384, 3
    %v437 = vsel %vm412, %v434, %v436
    %v438 = vrot.slane %v180, 3
    %v439 = vrot.slane %v181, 3
    %v440 = vsel %vm412, %v438, %v439
    %v441 = vrot.slane %v385, 3
    %v442 = vsel %vm412, %v439, %v441
    %v443 = vrot.slane %v182, 3
    %v444 = vrot.slane %v183, 3
    %v445 = vsel %vm412, %v443, %v444
    %v446 = vrot.slane %v386, 3
    %v447 = vsel %vm412, %v444, %v446
    %v448 = vrot.slane %v184, 3
    %v449 = vrot.slane %v185, 3
    %v450 = vsel %vm412, %v448, %v449
    %v451 = vrot.slane %v387, 3
    %v452 = vsel %vm412, %v449, %v451
    %v469 = vadd.f32 %v364, %v415
    %v470 = vadd.f32 %v365, %v417
    %v471 = vadd.f32 %v366, %v420
    %v472 = vadd.f32 %v367, %v422
    %v473 = vadd.f32 %v368, %v425
    %v474 = vadd.f32 %v369, %v427
    %v475 = vadd.f32 %v370, %v430
    %v476 = vadd.f32 %v371, %v432
    %v477 = vadd.f32 %v372, %v435
    %v478 = vadd.f32 %v373, %v437
    %v479 = vadd.f32 %v374, %v440
    %v480 = vadd.f32 %v375, %v442
    %v481 = vadd.f32 %v376, %v445
    %v482 = vadd.f32 %v377, %v447
    %v483 = vadd.f32 %v378, %v450
    %v484 = vadd.f32 %v379, %v452
    %v485 = vmul.f32 %v469, 0.125
    %v486 = vmul.f32 %v470, 0.125
    %v487 = vmul.f32 %v471, 0.125
    %v488 = vmul.f32 %v472, 0.125
    %v489 = vmul.f32 %v473, 0.125
    %v490 = vmul.f32 %v474, 0.125
    %v491 = vmul.f32 %v475, 0.125
    %v492 = vmul.f32 %v476, 0.125
    %v493 = vmul.f32 %v477, 0.125
    %v494 = vmul.f32 %v478, 0.125
    %v495 = vmul.f32 %v479, 0.125
    %v496 = vmul.f32 %v480, 0.125
    %v497 = vmul.f32 %v481, 0.125
    %v498 = vmul.f32 %v482, 0.125
    %v499 = vmul.f32 %v483, 0.125
    %v500 = vmul.f32 %v484, 0.125
    %v501 = vmul.f32 %v469, 0.375
    %v502 = vmul.f32 %v470, 0.375
    %v503 = vmul.f32 %v471, 0.375
    %v504 = vmul.f32 %v472, 0.375
    %v505 = vmul.f32 %v473, 0.375
    %v506 = vmul.f32 %v474, 0.375
    %v507 = vmul.f32 %v475, 0.375
    %v508 = vmul.f32 %v476, 0.375
    %v509 = vmul.f32 %v477, 0.375
    %v510 = vmul.f32 %v478, 0.375
    %v511 = vmul.f32 %v479, 0.375
    %v512 = vmul.f32 %v480, 0.375
    %v513 = vmul.f32 %v481, 0.375
    %v514 = vmul.f32 %v482, 0.375
    %v515 = vmul.f32 %v483, 0.375
    %v516 = vmul.f32 %v484, 0.375
    %533 = vrot.lane.b32.xlu0 %v501, 127
    %v534 = vpop.permute.xlu0 %533
    %535 = vrot.lane.b32.xlu0 %v502, 127
    %v536 = vpop.permute.xlu0 %535
    %537 = vrot.lane.b32.xlu0 %v503, 127
    %v538 = vpop.permute.xlu0 %537
    %539 = vrot.lane.b32.xlu0 %v504, 127
    %v540 = vpop.permute.xlu0 %539
    %541 = vrot.lane.b32.xlu0 %v505, 127
    %v542 = vpop.permute.xlu0 %541
    %543 = vrot.lane.b32.xlu0 %v506, 127
    %v544 = vpop.permute.xlu0 %543
    %545 = vrot.lane.b32.xlu0 %v507, 127
    %v546 = vpop.permute.xlu0 %545
    %547 = vrot.lane.b32.xlu0 %v508, 127
    %v548 = vpop.permute.xlu0 %547
    %549 = vrot.lane.b32.xlu0 %v509, 127
    %v550 = vpop.permute.xlu0 %549
    %551 = vrot.lane.b32.xlu0 %v510, 127
    %v552 = vpop.permute.xlu0 %551
    %553 = vrot.lane.b32.xlu0 %v511, 127
    %v554 = vpop.permute.xlu0 %553
    %555 = vrot.lane.b32.xlu0 %v512, 127
    %v556 = vpop.permute.xlu0 %555
    %557 = vrot.lane.b32.xlu0 %v513, 127
    %v558 = vpop.permute.xlu0 %557
    %559 = vrot.lane.b32.xlu0 %v514, 127
    %v560 = vpop.permute.xlu0 %559
    %561 = vrot.lane.b32.xlu0 %v515, 127
    %v562 = vpop.permute.xlu0 %561
    %563 = vrot.lane.b32.xlu0 %v516, 127
    %v564 = vpop.permute.xlu0 %563
    %v581 = vadd.f32 %v485, %v534
    %v582 = vadd.f32 %v486, %v536
    %v583 = vadd.f32 %v487, %v538
    %v584 = vadd.f32 %v488, %v540
    %v585 = vadd.f32 %v489, %v542
    %v586 = vadd.f32 %v490, %v544
    %v587 = vadd.f32 %v491, %v546
    %v588 = vadd.f32 %v492, %v548
    %v589 = vadd.f32 %v493, %v550
    %v590 = vadd.f32 %v494, %v552
    %v591 = vadd.f32 %v495, %v554
    %v592 = vadd.f32 %v496, %v556
    %v593 = vadd.f32 %v497, %v558
    %v594 = vadd.f32 %v498, %v560
    %v595 = vadd.f32 %v499, %v562
    %v596 = vadd.f32 %v500, %v564
    %597 = vrot.lane.b32.xlu0 %v501, 126
    %v598 = vpop.permute.xlu0 %597
    %599 = vrot.lane.b32.xlu0 %v502, 126
    %v600 = vpop.permute.xlu0 %599
    %601 = vrot.lane.b32.xlu0 %v503, 126
    %v602 = vpop.permute.xlu0 %601
    %603 = vrot.lane.b32.xlu0 %v504, 126
    %v604 = vpop.permute.xlu0 %603
    %605 = vrot.lane.b32.xlu0 %v505, 126
    %v606 = vpop.permute.xlu0 %605
    %607 = vrot.lane.b32.xlu0 %v506, 126
    %v608 = vpop.permute.xlu0 %607
    %609 = vrot.lane.b32.xlu0 %v507, 126
    %v610 = vpop.permute.xlu0 %609
    %611 = vrot.lane.b32.xlu0 %v508, 126
    %v612 = vpop.permute.xlu0 %611
    %613 = vrot.lane.b32.xlu0 %v509, 126
    %v614 = vpop.permute.xlu0 %613
    %615 = vrot.lane.b32.xlu0 %v510, 126
    %v616 = vpop.permute.xlu0 %615
    %617 = vrot.lane.b32.xlu0 %v511, 126
    %v618 = vpop.permute.xlu0 %617
    %619 = vrot.lane.b32.xlu0 %v512, 126
    %v620 = vpop.permute.xlu0 %619
    %621 = vrot.lane.b32.xlu0 %v513, 126
    %v622 = vpop.permute.xlu0 %621
    %623 = vrot.lane.b32.xlu0 %v514, 126
    %v624 = vpop.permute.xlu0 %623
    %625 = vrot.lane.b32.xlu0 %v515, 126
    %v626 = vpop.permute.xlu0 %625
    %627 = vrot.lane.b32.xlu0 %v516, 126
    %v628 = vpop.permute.xlu0 %627
    %v645 = vadd.f32 %v581, %v598
    %v646 = vadd.f32 %v582, %v600
    %v647 = vadd.f32 %v583, %v602
    %v648 = vadd.f32 %v584, %v604
    %v649 = vadd.f32 %v585, %v606
    %v650 = vadd.f32 %v586, %v608
    %v651 = vadd.f32 %v587, %v610
    %v652 = vadd.f32 %v588, %v612
    %v653 = vadd.f32 %v589, %v614
    %v654 = vadd.f32 %v590, %v616
    %v655 = vadd.f32 %v591, %v618
    %v656 = vadd.f32 %v592, %v620
    %v657 = vadd.f32 %v593, %v622
    %v658 = vadd.f32 %v594, %v624
    %v659 = vadd.f32 %v595, %v626
    %v660 = vadd.f32 %v596, %v628
    %677 = vrot.lane.b32.xlu0 %v485, 125
    %v678 = vpop.permute.xlu0 %677
    %679 = vrot.lane.b32.xlu0 %v486, 125
    %v680 = vpop.permute.xlu0 %679
    %681 = vrot.lane.b32.xlu0 %v487, 125
    %v682 = vpop.permute.xlu0 %681
    %683 = vrot.lane.b32.xlu0 %v488, 125
    %v684 = vpop.permute.xlu0 %683
    %685 = vrot.lane.b32.xlu0 %v489, 125
    %v686 = vpop.permute.xlu0 %685
    %687 = vrot.lane.b32.xlu0 %v490, 125
    %v688 = vpop.permute.xlu0 %687
    %689 = vrot.lane.b32.xlu0 %v491, 125
    %v690 = vpop.permute.xlu0 %689
    %691 = vrot.lane.b32.xlu0 %v492, 125
    %v692 = vpop.permute.xlu0 %691
    %693 = vrot.lane.b32.xlu0 %v493, 125
    %v694 = vpop.permute.xlu0 %693
    %695 = vrot.lane.b32.xlu0 %v494, 125
    %v696 = vpop.permute.xlu0 %695
    %697 = vrot.lane.b32.xlu0 %v495, 125
    %v698 = vpop.permute.xlu0 %697
    %699 = vrot.lane.b32.xlu0 %v496, 125
    %v700 = vpop.permute.xlu0 %699
    %701 = vrot.lane.b32.xlu0 %v497, 125
    %v702 = vpop.permute.xlu0 %701
    %703 = vrot.lane.b32.xlu0 %v498, 125
    %v704 = vpop.permute.xlu0 %703
    %705 = vrot.lane.b32.xlu0 %v499, 125
    %v706 = vpop.permute.xlu0 %705
    %707 = vrot.lane.b32.xlu0 %v500, 125
    %v708 = vpop.permute.xlu0 %707
    %v725 = vadd.f32 %v645, %v678
    %v726 = vadd.f32 %v646, %v680
    %v727 = vadd.f32 %v647, %v682
    %v728 = vadd.f32 %v648, %v684
    %v729 = vadd.f32 %v649, %v686
    %v730 = vadd.f32 %v650, %v688
    %v731 = vadd.f32 %v651, %v690
    %v732 = vadd.f32 %v652, %v692
    %v733 = vadd.f32 %v653, %v694
    %v734 = vadd.f32 %v654, %v696
    %v735 = vadd.f32 %v655, %v698
    %v736 = vadd.f32 %v656, %v700
    %v737 = vadd.f32 %v657, %v702
    %v738 = vadd.f32 %v658, %v704
    %v739 = vadd.f32 %v659, %v706
    %v740 = vadd.f32 %v660, %v708
    %vm741 = vcmask 130048
    %742 = vst.msk [vmem:[#allocation6] sm:$0xff] %vm741, %v725
    %743 = vst.msk [vmem:[#allocation6 + $0x8] sm:$0xff] %vm741, %v726
    %744 = vst.msk [vmem:[#allocation6 + $0x10] sm:$0xff] %vm741, %v727
    %745 = vst.msk [vmem:[#allocation6 + $0x18] sm:$0xff] %vm741, %v728
    %746 = vst.msk [vmem:[#allocation6 + $0x20] sm:$0xff] %vm741, %v729
    %747 = vst.msk [vmem:[#allocation6 + $0x28] sm:$0xff] %vm741, %v730
    %748 = vst.msk [vmem:[#allocation6 + $0x30] sm:$0xff] %vm741, %v731
    %749 = vst.msk [vmem:[#allocation6 + $0x38] sm:$0xff] %vm741, %v732
    %750 = vst.msk [vmem:[#allocation6 + $0x40] sm:$0xff] %vm741, %v733
    %751 = vst.msk [vmem:[#allocation6 + $0x48] sm:$0xff] %vm741, %v734
    %752 = vst.msk [vmem:[#allocation6 + $0x50] sm:$0xff] %vm741, %v735
    %753 = vst.msk [vmem:[#allocation6 + $0x58] sm:$0xff] %vm741, %v736
    %754 = vst.msk [vmem:[#allocation6 + $0x60] sm:$0xff] %vm741, %v737
    %755 = vst.msk [vmem:[#allocation6 + $0x68] sm:$0xff] %vm741, %v738
    %756 = vst.msk [vmem:[#allocation6 + $0x70] sm:$0xff] %vm741, %v739
    %757 = vst.msk [vmem:[#allocation6 + $0x78] sm:$0xff] %vm741, %v740
    // Predicated region
    $region10: #{tpu_custom_call.1} parent=1 // pred_check
      _
    $region11: #{tpu_custom_call.1} parent=1 // pred_check_branch
      %759 = sbr.rel (0) target = $region13
    $region12: #{tpu_custom_call.1} parent=1 // pred_region
      %s761 = ssub.s32 2048, 2048
      %762 = vsyncadd [#allocation5], %s761
      %s763 = sshll.u32 [#allocation6], 4
      %s764 = int_to_ptr.vmem [resolvable:$true] %s763
      %769 = dma.vmem_to_hbm [thread:$0]  %s764, 2048, %s1, [#allocation5], 128, 128, 8
    $region13: #{tpu_custom_call.1} parent=1 // pred_fallthru
      _
    // Predicated region
    $region14: #{tpu_custom_call.1} parent=1 // pred_check
      _
    $region15: #{tpu_custom_call.1} parent=1 // pred_check_branch
      %771 = sbr.rel (0) target = $region17
    $region16: #{tpu_custom_call.1} parent=1 // pred_region
      %772 = dma.done [#allocation5], 2048
    $region17: #{tpu_custom_call.1} parent=1 // pred_fallthru
      _
    %773 = vsyncpa [#allocation4], 1
    %774 = vsyncpa [#allocation5], 1

</llo_original>
